<compile_context>
chip_gen: v7x
topology: tpu7x:2x2x1
jax: 0.10.0
libtpu: 0.0.40
codegen_flags: <defaults>
</compile_context>

<pallas_src>
import functools

import jax
import jax.numpy as jnp
from jax import lax
from jax.experimental import pallas as pl
from jax.experimental.pallas import tpu as pltpu


# ----------------------------- Pallas kernel ------------------------------- #

def duration_predictor_kernel(
    x_ref, m_ref,
    w1_ref, b1_ref, g1_ref, be1_ref,
    w2_ref, b2_ref, g2_ref, be2_ref,
    wp_ref, bp_ref,
    out_ref,
    *, seq_len: int, kernel_size: int, eps: float,
):
    # Shapes per grid step (leading batch-block dim squeezed via BlockSpec None):
    #   x_ref  : (Cin, N)    N = bb*T, batch*time flattened on the lane axis
    #   m_ref  : (1, N)      mask, lane-dense (broadcasts over channel sublanes)
    #   w1_ref : (F, K*Cin)  im2col-flattened conv weight, bf16
    #   w2_ref : (F, K*F)    bf16
    #   b/g/be : (F, 1)      per-channel params, f32
    #   wp_ref : (F, 1)      1x1 projection weight, f32
    #   bp_ref : (1, 1)
    #   out_ref: (1, N)      lane-dense output
    n = x_ref.shape[-1]
    K = kernel_size
    pad = K // 2
    T = seq_len
    batch_fold = n // T  # how many sequences share the lane axis

    x = x_ref[...]          # (Cin, N) f32
    m = m_ref[...]          # (1, N)   f32

    # Per-tap validity masks, hoisted out of the conv tap loop and shared by
    # both convs.  Only needed when several sequences are flattened onto the
    # lane axis (taps must not leak across sequence boundaries); the outer
    # edges are handled for free by the zero padding below.
    if batch_fold > 1:
        t_in_seq = lax.broadcasted_iota(jnp.int32, (1, n), 1) % T
        valid_by_tap = []
        for k in range(K):
            d = k - pad
            if d == 0:
                valid_by_tap.append(None)
            else:
                valid_by_tap.append(
                    jnp.logical_and(t_in_seq + d >= 0, t_in_seq + d < T))
    else:
        valid_by_tap = [None] * K

    def conv1d_same(h, w_ref, b_ref):
        # im2col along the sublane (channel) axis -> ONE MXU matmul with a
        # K-times deeper contraction instead of K short ones.  Taps come from
        # a single zero-pad of the lane axis + K static slices (no roll).
        C = h.shape[0]
        zpad = jnp.zeros((C, pad), h.dtype)
        hp = jnp.concatenate([zpad, h, zpad], axis=1)        # (C, N + 2*pad)
        cols = []
        for k in range(K):
            col = hp[:, k:k + n]                              # shift by d = k - pad
            valid = valid_by_tap[k]
            if valid is not None:
                col = jnp.where(valid, col, 0.0)              # no cross-seq leak
            cols.append(col)
        h_cat = jnp.concatenate(cols, axis=0).astype(jnp.bfloat16)   # (K*C, N)
        y = jnp.dot(w_ref[...], h_cat, preferred_element_type=jnp.float32)
        return y + b_ref[...]                                 # (F,N) + (F,1)

    def layer_norm(h, g_ref, be_ref):
        # Normalize over channels (sublane axis) == F.layer_norm on the
        # transposed activations.  Stays in f32 (VPU / EUP work).
        mu = jnp.mean(h, axis=0, keepdims=True)
        var = jnp.mean((h - mu) * (h - mu), axis=0, keepdims=True)
        return (h - mu) * lax.rsqrt(var + eps) * g_ref[...] + be_ref[...]

    # conv_1(x * mask) -> relu -> norm_1 -> (dropout = id)
    h = conv1d_same(x * m, w1_ref, b1_ref)
    h = jnp.maximum(h, 0.0)
    h = layer_norm(h, g1_ref, be1_ref)

    # conv_2(h * mask) -> relu -> norm_2 -> (dropout = id)
    h = conv1d_same(h * m, w2_ref, b2_ref)
    h = jnp.maximum(h, 0.0)
    h = layer_norm(h, g2_ref, be2_ref)

    # proj (1x1 conv) as VPU multiply + cross-sublane reduction (avoids an
    # N=1 MXU matmul); result is already lane-dense (1, N).
    y = jnp.sum((h * m) * wp_ref[...], axis=0, keepdims=True) + bp_ref[...]
    out_ref[...] = (y * m).astype(out_ref.dtype)


# ------------------------------- Wrapper ------------------------------------ #

def _choose_batch_block(batch, seq_len, target_lanes=512):
    """Largest divisor of `batch` to fold onto the lane axis (bigger matmul N),
    but keep >=2 grid steps when batch >= 2 so the 'parallel' grid axis can be
    sharded across both TensorCores on v7x (harmless on v5e/v6e)."""
    divisors = [d for d in range(1, batch + 1) if batch % d == 0]
    fits = [d for d in divisors if d * seq_len <= max(target_lanes, seq_len)]
    bb = max(fits) if fits else 1
    if batch >= 2 and batch // bb < 2:
        two_step = [d for d in divisors if batch // d >= 2]
        if two_step:
            bb = max(two_step)
    return bb


def duration_predictor(x, x_mask, params, *, eps=1e-5):
    """VITS DurationPredictor forward.

    x      : (B, Cin, T) float32   (PyTorch NCL layout)
    x_mask : (B, 1, T)   float32
    returns: (B, 1, T)   float32
    """
    B, Cin, T = x.shape
    Fch, _, K = params["w1"].shape
    assert K % 2 == 1, "kernel_size must be odd for 'same' padding"
    assert T > K // 2, "sequence must be longer than the conv half-width"

    bb = _choose_batch_block(B, T)
    nb = B // bb
    n = bb * T

    # Regroup the batch onto the lane (time) axis: (nb, C, bb*T).
    x_r = x.reshape(nb, bb, Cin, T).transpose(0, 2, 1, 3).reshape(nb, Cin, n)
    m_r = x_mask.reshape(nb, bb, 1, T).transpose(0, 2, 1, 3).reshape(nb, 1, n)

    # im2col-flattened conv weights pre-cast to bf16 (MXU-native on all gens);
    # per-channel params as (F, 1) columns (channels live on sublanes).
    w1f = params["w1"].transpose(0, 2, 1).reshape(Fch, K * Cin).astype(jnp.bfloat16)
    w2f = params["w2"].transpose(0, 2, 1).reshape(Fch, K * Fch).astype(jnp.bfloat16)
    b1 = params["b1"].reshape(Fch, 1)
    g1 = params["gamma1"].reshape(Fch, 1)
    be1 = params["beta1"].reshape(Fch, 1)
    b2 = params["b2"].reshape(Fch, 1)
    g2 = params["gamma2"].reshape(Fch, 1)
    be2 = params["beta2"].reshape(Fch, 1)
    wp = params["wp"].reshape(Fch, 1)
    bp = params["bp"].reshape(1, 1)

    kernel = functools.partial(
        duration_predictor_kernel, seq_len=T, kernel_size=K, eps=eps)

    full = lambda b: (0, 0)
    grid_spec = pltpu.PrefetchScalarGridSpec(
        num_scalar_prefetch=0,
        grid=(nb,),
        in_specs=[
            pl.BlockSpec((None, Cin, n), lambda b: (b, 0, 0)),   # x   (Cin, N)
            pl.BlockSpec((None, 1, n), lambda b: (b, 0, 0)),     # mask (1, N)
            pl.BlockSpec((Fch, K * Cin), full),                  # w1 (im2col, bf16)
            pl.BlockSpec((Fch, 1), full),                        # b1
            pl.BlockSpec((Fch, 1), full),                        # gamma1
            pl.BlockSpec((Fch, 1), full),                        # beta1
            pl.BlockSpec((Fch, K * Fch), full),                  # w2 (im2col, bf16)
            pl.BlockSpec((Fch, 1), full),                        # b2
            pl.BlockSpec((Fch, 1), full),                        # gamma2
            pl.BlockSpec((Fch, 1), full),                        # beta2
            pl.BlockSpec((Fch, 1), full),                        # wp
            pl.BlockSpec((1, 1), full),                          # bp
        ],
        out_specs=pl.BlockSpec((None, 1, n), lambda b: (b, 0, 0)),
    )

    out = pl.pallas_call(
        kernel,
        out_shape=jax.ShapeDtypeStruct((nb, 1, n), jnp.float32),
        grid_spec=grid_spec,
        compiler_params=pltpu.CompilerParams(
            dimension_semantics=("parallel",),
            # Footprint is tiny at these shapes; set explicitly so any future
            # T-tiling is budgeted rather than relying on the scoped default.
            vmem_limit_bytes=32 * 1024 * 1024,
        ),
    )(x_r, m_r, w1f, b1, g1, be1, w2f, b2, g2, be2, wp, bp)

    # (nb, 1, bb*T) -> (B, 1, T)
    return out.reshape(nb, 1, bb, T).transpose(0, 2, 1, 3).reshape(B, 1, T)


# ------------------------- Pure-JAX reference ------------------------------- #

def _conv1d_ncl_ref(x, w, b, mm_dtype):
    # x: (B, C, T) already masked; w: (F, C, K) PyTorch layout; b: (F,)
    K = w.shape[-1]
    pad = K // 2
    T = x.shape[-1]
    xp = jnp.pad(x, ((0, 0), (0, 0), (pad, pad))).astype(mm_dtype)
    w = w.astype(mm_dtype)
    out = sum(
        jnp.einsum("bct,fc->bft", xp[:, :, k:k + T], w[:, :, k],
                   preferred_element_type=jnp.float32)
        for k in range(K))
    return out + b[None, :, None]


def _layer_norm_ncl_ref(x, gamma, beta, eps):
    mu = jnp.mean(x, axis=1, keepdims=True)
    var = jnp.mean(jnp.square(x - mu), axis=1, keepdims=True)
    return (x - mu) / jnp.sqrt(var + eps) * gamma[None, :, None] + beta[None, :, None]


def duration_predictor_ref(x, x_mask, params, *, eps=1e-5,
                           matmul_dtype=jnp.float32):
    h = _conv1d_ncl_ref(x * x_mask, params["w1"], params["b1"], matmul_dtype)
    h = jnp.maximum(h, 0.0)
    h = _layer_norm_ncl_ref(h, params["gamma1"], params["beta1"], eps)
    h = _conv1d_ncl_ref(h * x_mask, params["w2"], params["b2"], matmul_dtype)
    h = jnp.maximum(h, 0.0)
    h = _layer_norm_ncl_ref(h, params["gamma2"], params["beta2"], eps)
    y = jnp.einsum("bct,fc->bft", h * x_mask, params["wp"][:, :, 0])
    y = y + params["bp"][None, :, None]
    return y * x_mask


# --------------------------------- Main ------------------------------------- #

def _check(out, x, x_mask, params):
    ref_bf16 = duration_predictor_ref(x, x_mask, params,
                                      matmul_dtype=jnp.bfloat16)
    ref_f32 = duration_predictor_ref(x, x_mask, params,
                                     matmul_dtype=jnp.float32)
    err_m = jnp.max(jnp.abs(out - ref_bf16))
    err_f = jnp.max(jnp.abs(out - ref_f32))
    assert jnp.allclose(out, ref_bf16, atol=1e-2, rtol=1e-2), (
        f"matched-precision max err {err_m}")
    assert jnp.allclose(out, ref_f32, atol=6e-2, rtol=6e-2), (
        f"f32 max err {err_f}")


if __name__ == "__main__":
    # Module hyperparameters (small, consistent with DurationPredictor.__init__):
    B, T = 2, 16
    in_channels, filter_channels, kernel_size = 16, 32, 3
    p_dropout = 0.5  # dropout is identity at inference

    key = jax.random.PRNGKey(0)
    k_x, k_w1, k_b1, k_w2, k_b2, k_wp, k_bp, k_x2 = jax.random.split(key, 8)

    def u(k, shape, fan_in):
        bound = 1.0 / (fan_in ** 0.5)
        return jax.random.uniform(k, shape, jnp.float32, -bound, bound)

    params = {
        # PyTorch Conv1d layouts: weight (C_out, C_in, K), bias (C_out,)
        "w1": u(k_w1, (filter_channels, in_channels, kernel_size),
                in_channels * kernel_size),
        "b1": u(k_b1, (filter_channels,), in_channels * kernel_size),
        "gamma1": jnp.ones((filter_channels,), jnp.float32),
        "beta1": jnp.zeros((filter_channels,), jnp.float32),
        "w2": u(k_w2, (filter_channels, filter_channels, kernel_size),
                filter_channels * kernel_size),
        "b2": u(k_b2, (filter_channels,), filter_channels * kernel_size),
        "gamma2": jnp.ones((filter_channels,), jnp.float32),
        "beta2": jnp.zeros((filter_channels,), jnp.float32),
        # proj (1x1 conv): weight (1, F, 1), bias (1,)
        "wp": u(k_wp, (1, filter_channels, 1), filter_channels),
        "bp": u(k_bp, (1,), filter_channels),
    }

    # Case 1: inputs in PyTorch NCL layout, ragged sequence-length mask.
    x = jax.random.normal(k_x, (B, in_channels, T), jnp.float32)
    lengths = jnp.array([T, T - 5], jnp.int32)
    t_ids = jnp.arange(T)[None, None, :]
    x_mask = (t_ids < lengths[:, None, None]).astype(jnp.float32)

    out = duration_predictor(x, x_mask, params)
    out = jax.block_until_ready(out)
    assert out.shape == (B, 1, T)
    _check(out, x, x_mask, params)

    # Case 2: larger batch so several sequences fold onto the lane axis
    # (exercises the cross-sequence conv-tap masking path).
    B2, T2 = 4, 12
    x2 = jax.random.normal(k_x2, (B2, in_channels, T2), jnp.float32)
    lengths2 = jnp.array([T2, 7, T2, 3], jnp.int32)
    t_ids2 = jnp.arange(T2)[None, None, :]
    x_mask2 = (t_ids2 < lengths2[:, None, None]).astype(jnp.float32)

    out2 = duration_predictor(x2, x_mask2, params)
    out2 = jax.block_until_ready(out2)
    assert out2.shape == (B2, 1, T2)
    _check(out2, x2, x_mask2, params)

    print("KERNEL_OK")
</pallas_src>

<mosaic_0001>
module attributes {stable_mosaic.version = 11 : i64} {
  func.func @duration_predictor_kernel(%arg0: i32, %arg1: memref<1x16x16xf32, #tpu.memory_space<vmem>>, %arg2: memref<1x1x16xf32, #tpu.memory_space<vmem>>, %arg3: memref<32x48xbf16, #tpu.memory_space<vmem>>, %arg4: memref<32x1xf32, #tpu.memory_space<vmem>>, %arg5: memref<32x1xf32, #tpu.memory_space<vmem>>, %arg6: memref<32x1xf32, #tpu.memory_space<vmem>>, %arg7: memref<32x96xbf16, #tpu.memory_space<vmem>>, %arg8: memref<32x1xf32, #tpu.memory_space<vmem>>, %arg9: memref<32x1xf32, #tpu.memory_space<vmem>>, %arg10: memref<32x1xf32, #tpu.memory_space<vmem>>, %arg11: memref<32x1xf32, #tpu.memory_space<vmem>>, %arg12: memref<1x1xf32, #tpu.memory_space<vmem>>, %arg13: memref<1x1x16xf32, #tpu.memory_space<vmem>>) attributes {dimension_semantics = [#tpu.dimension_semantics<parallel>], iteration_bounds = array<i64: 2>, scalar_prefetch = 0 : i64, scratch_operands = 0 : i64, tpu.core_type = #tpu.core_type<tc>, window_params = [{transform_indices = @transform_0, window_bounds = array<i64: 1, 16, 16>}, {transform_indices = @transform_1, window_bounds = array<i64: 1, 1, 16>}, {pipeline_mode = #tpu.pipeline_mode<synchronous>, transform_indices = @transform_2, window_bounds = array<i64: 32, 48>}, {pipeline_mode = #tpu.pipeline_mode<synchronous>, transform_indices = @transform_3, window_bounds = array<i64: 32, 1>}, {pipeline_mode = #tpu.pipeline_mode<synchronous>, transform_indices = @transform_4, window_bounds = array<i64: 32, 1>}, {pipeline_mode = #tpu.pipeline_mode<synchronous>, transform_indices = @transform_5, window_bounds = array<i64: 32, 1>}, {pipeline_mode = #tpu.pipeline_mode<synchronous>, transform_indices = @transform_6, window_bounds = array<i64: 32, 96>}, {pipeline_mode = #tpu.pipeline_mode<synchronous>, transform_indices = @transform_7, window_bounds = array<i64: 32, 1>}, {pipeline_mode = #tpu.pipeline_mode<synchronous>, transform_indices = @transform_8, window_bounds = array<i64: 32, 1>}, {pipeline_mode = #tpu.pipeline_mode<synchronous>, transform_indices = @transform_9, window_bounds = array<i64: 32, 1>}, {pipeline_mode = #tpu.pipeline_mode<synchronous>, transform_indices = @transform_10, window_bounds = array<i64: 32, 1>}, {pipeline_mode = #tpu.pipeline_mode<synchronous>, transform_indices = @transform_11, window_bounds = array<i64: 1, 1>}, {transform_indices = @transform_12, window_bounds = array<i64: 1, 1, 16>}]} {
    %c0 = arith.constant 0 : index
    %c0_0 = arith.constant 0 : index
    %c0_1 = arith.constant 0 : index
    %0 = vector.load %arg1[%c0, %c0_0, %c0_1] : memref<1x16x16xf32, #tpu.memory_space<vmem>>, vector<1x16x16xf32>
    %1 = vector.shape_cast %0 : vector<1x16x16xf32> to vector<16x16xf32>
    %c0_2 = arith.constant 0 : index
    %c0_3 = arith.constant 0 : index
    %c0_4 = arith.constant 0 : index
    %2 = vector.load %arg2[%c0_2, %c0_3, %c0_4] : memref<1x1x16xf32, #tpu.memory_space<vmem>>, vector<1x1x16xf32>
    %3 = vector.shape_cast %2 : vector<1x1x16xf32> to vector<1x16xf32>
    %4 = vector.broadcast %3 : vector<1x16xf32> to vector<16x16xf32>
    %5 = arith.mulf %1, %4 : vector<16x16xf32>
    %cst = arith.constant 0.000000e+00 : f32
    %6 = vector.broadcast %cst : f32 to vector<16x1xf32>
    %7 = tpu.concatenate %6, %5, %6 in 1 : vector<16x1xf32>, vector<16x16xf32>, vector<16x1xf32> -> vector<16x18xf32>
    %8 = vector.extract_strided_slice %7 {offsets = [0, 0], sizes = [16, 16], strides = [1, 1]} : vector<16x18xf32> to vector<16x16xf32>
    %9 = vector.extract_strided_slice %7 {offsets = [0, 1], sizes = [16, 16], strides = [1, 1]} : vector<16x18xf32> to vector<16x16xf32>
    %10 = vector.extract_strided_slice %7 {offsets = [0, 2], sizes = [16, 16], strides = [1, 1]} : vector<16x18xf32> to vector<16x16xf32>
    %11 = tpu.concatenate %8, %9, %10 in 0 : vector<16x16xf32>, vector<16x16xf32>, vector<16x16xf32> -> vector<48x16xf32>
    %12 = arith.truncf %11 : vector<48x16xf32> to vector<48x16xbf16>
    %c0_5 = arith.constant 0 : index
    %c0_6 = arith.constant 0 : index
    %13 = vector.load %arg3[%c0_5, %c0_6] : memref<32x48xbf16, #tpu.memory_space<vmem>>, vector<32x48xbf16>
    %cst_7 = arith.constant dense<0.000000e+00> : vector<32x16xf32>
    %14 = tpu.matmul %13, %12, %cst_7 {dimension_numbers = #tpu.dot_dimension_numbers<[1], [0], [0], [1], [0, 0, 1, 1], [], []>} : vector<32x48xbf16>, vector<48x16xbf16>, vector<32x16xf32> -> vector<32x16xf32>
    %c0_8 = arith.constant 0 : index
    %c0_9 = arith.constant 0 : index
    %15 = vector.load %arg4[%c0_8, %c0_9] : memref<32x1xf32, #tpu.memory_space<vmem>>, vector<32x1xf32>
    %16 = vector.broadcast %15 : vector<32x1xf32> to vector<32x16xf32>
    %17 = arith.addf %14, %16 : vector<32x16xf32>
    %cst_10 = arith.constant 0.000000e+00 : f32
    %18 = vector.broadcast %cst_10 : f32 to vector<32x16xf32>
    %19 = arith.maximumf %17, %18 : vector<32x16xf32>
    %cst_11 = arith.constant dense<0.000000e+00> : vector<16xf32>
    %20 = vector.multi_reduction <add>, %19, %cst_11 [0] : vector<32x16xf32> to vector<16xf32>
    %21 = vector.shape_cast %20 : vector<16xf32> to vector<1x16xf32>
    %cst_12 = arith.constant 3.200000e+01 : f32
    %22 = vector.broadcast %cst_12 : f32 to vector<1x16xf32>
    %23 = arith.divf %21, %22 : vector<1x16xf32>
    %24 = vector.broadcast %23 : vector<1x16xf32> to vector<32x16xf32>
    %25 = arith.subf %19, %24 : vector<32x16xf32>
    %26 = vector.broadcast %23 : vector<1x16xf32> to vector<32x16xf32>
    %27 = arith.subf %19, %26 : vector<32x16xf32>
    %28 = arith.mulf %25, %27 : vector<32x16xf32>
    %cst_13 = arith.constant dense<0.000000e+00> : vector<16xf32>
    %29 = vector.multi_reduction <add>, %28, %cst_13 [0] : vector<32x16xf32> to vector<16xf32>
    %30 = vector.shape_cast %29 : vector<16xf32> to vector<1x16xf32>
    %cst_14 = arith.constant 3.200000e+01 : f32
    %31 = vector.broadcast %cst_14 : f32 to vector<1x16xf32>
    %32 = arith.divf %30, %31 : vector<1x16xf32>
    %33 = vector.broadcast %23 : vector<1x16xf32> to vector<32x16xf32>
    %34 = arith.subf %19, %33 : vector<32x16xf32>
    %cst_15 = arith.constant 9.99999974E-6 : f32
    %35 = vector.broadcast %cst_15 : f32 to vector<1x16xf32>
    %36 = arith.addf %32, %35 : vector<1x16xf32>
    %37 = math.rsqrt %36 : vector<1x16xf32>
    %38 = vector.broadcast %37 : vector<1x16xf32> to vector<32x16xf32>
    %39 = arith.mulf %34, %38 : vector<32x16xf32>
    %c0_16 = arith.constant 0 : index
    %c0_17 = arith.constant 0 : index
    %40 = vector.load %arg5[%c0_16, %c0_17] : memref<32x1xf32, #tpu.memory_space<vmem>>, vector<32x1xf32>
    %41 = vector.broadcast %40 : vector<32x1xf32> to vector<32x16xf32>
    %42 = arith.mulf %39, %41 : vector<32x16xf32>
    %c0_18 = arith.constant 0 : index
    %c0_19 = arith.constant 0 : index
    %43 = vector.load %arg6[%c0_18, %c0_19] : memref<32x1xf32, #tpu.memory_space<vmem>>, vector<32x1xf32>
    %44 = vector.broadcast %43 : vector<32x1xf32> to vector<32x16xf32>
    %45 = arith.addf %42, %44 : vector<32x16xf32>
    %46 = vector.broadcast %3 : vector<1x16xf32> to vector<32x16xf32>
    %47 = arith.mulf %45, %46 : vector<32x16xf32>
    %cst_20 = arith.constant 0.000000e+00 : f32
    %48 = vector.broadcast %cst_20 : f32 to vector<32x1xf32>
    %49 = tpu.concatenate %48, %47, %48 in 1 : vector<32x1xf32>, vector<32x16xf32>, vector<32x1xf32> -> vector<32x18xf32>
    %50 = vector.extract_strided_slice %49 {offsets = [0, 0], sizes = [32, 16], strides = [1, 1]} : vector<32x18xf32> to vector<32x16xf32>
    %51 = vector.extract_strided_slice %49 {offsets = [0, 1], sizes = [32, 16], strides = [1, 1]} : vector<32x18xf32> to vector<32x16xf32>
    %52 = vector.extract_strided_slice %49 {offsets = [0, 2], sizes = [32, 16], strides = [1, 1]} : vector<32x18xf32> to vector<32x16xf32>
    %53 = tpu.concatenate %50, %51, %52 in 0 : vector<32x16xf32>, vector<32x16xf32>, vector<32x16xf32> -> vector<96x16xf32>
    %54 = arith.truncf %53 : vector<96x16xf32> to vector<96x16xbf16>
    %c0_21 = arith.constant 0 : index
    %c0_22 = arith.constant 0 : index
    %55 = vector.load %arg7[%c0_21, %c0_22] : memref<32x96xbf16, #tpu.memory_space<vmem>>, vector<32x96xbf16>
    %cst_23 = arith.constant dense<0.000000e+00> : vector<32x16xf32>
    %56 = tpu.matmul %55, %54, %cst_23 {dimension_numbers = #tpu.dot_dimension_numbers<[1], [0], [0], [1], [0, 0, 1, 1], [], []>} : vector<32x96xbf16>, vector<96x16xbf16>, vector<32x16xf32> -> vector<32x16xf32>
    %c0_24 = arith.constant 0 : index
    %c0_25 = arith.constant 0 : index
    %57 = vector.load %arg8[%c0_24, %c0_25] : memref<32x1xf32, #tpu.memory_space<vmem>>, vector<32x1xf32>
    %58 = vector.broadcast %57 : vector<32x1xf32> to vector<32x16xf32>
    %59 = arith.addf %56, %58 : vector<32x16xf32>
    %cst_26 = arith.constant 0.000000e+00 : f32
    %60 = vector.broadcast %cst_26 : f32 to vector<32x16xf32>
    %61 = arith.maximumf %59, %60 : vector<32x16xf32>
    %cst_27 = arith.constant dense<0.000000e+00> : vector<16xf32>
    %62 = vector.multi_reduction <add>, %61, %cst_27 [0] : vector<32x16xf32> to vector<16xf32>
    %63 = vector.shape_cast %62 : vector<16xf32> to vector<1x16xf32>
    %cst_28 = arith.constant 3.200000e+01 : f32
    %64 = vector.broadcast %cst_28 : f32 to vector<1x16xf32>
    %65 = arith.divf %63, %64 : vector<1x16xf32>
    %66 = vector.broadcast %65 : vector<1x16xf32> to vector<32x16xf32>
    %67 = arith.subf %61, %66 : vector<32x16xf32>
    %68 = vector.broadcast %65 : vector<1x16xf32> to vector<32x16xf32>
    %69 = arith.subf %61, %68 : vector<32x16xf32>
    %70 = arith.mulf %67, %69 : vector<32x16xf32>
    %cst_29 = arith.constant dense<0.000000e+00> : vector<16xf32>
    %71 = vector.multi_reduction <add>, %70, %cst_29 [0] : vector<32x16xf32> to vector<16xf32>
    %72 = vector.shape_cast %71 : vector<16xf32> to vector<1x16xf32>
    %cst_30 = arith.constant 3.200000e+01 : f32
    %73 = vector.broadcast %cst_30 : f32 to vector<1x16xf32>
    %74 = arith.divf %72, %73 : vector<1x16xf32>
    %75 = vector.broadcast %65 : vector<1x16xf32> to vector<32x16xf32>
    %76 = arith.subf %61, %75 : vector<32x16xf32>
    %cst_31 = arith.constant 9.99999974E-6 : f32
    %77 = vector.broadcast %cst_31 : f32 to vector<1x16xf32>
    %78 = arith.addf %74, %77 : vector<1x16xf32>
    %79 = math.rsqrt %78 : vector<1x16xf32>
    %80 = vector.broadcast %79 : vector<1x16xf32> to vector<32x16xf32>
    %81 = arith.mulf %76, %80 : vector<32x16xf32>
    %c0_32 = arith.constant 0 : index
    %c0_33 = arith.constant 0 : index
    %82 = vector.load %arg9[%c0_32, %c0_33] : memref<32x1xf32, #tpu.memory_space<vmem>>, vector<32x1xf32>
    %83 = vector.broadcast %82 : vector<32x1xf32> to vector<32x16xf32>
    %84 = arith.mulf %81, %83 : vector<32x16xf32>
    %c0_34 = arith.constant 0 : index
    %c0_35 = arith.constant 0 : index
    %85 = vector.load %arg10[%c0_34, %c0_35] : memref<32x1xf32, #tpu.memory_space<vmem>>, vector<32x1xf32>
    %86 = vector.broadcast %85 : vector<32x1xf32> to vector<32x16xf32>
    %87 = arith.addf %84, %86 : vector<32x16xf32>
    %88 = vector.broadcast %3 : vector<1x16xf32> to vector<32x16xf32>
    %89 = arith.mulf %87, %88 : vector<32x16xf32>
    %c0_36 = arith.constant 0 : index
    %c0_37 = arith.constant 0 : index
    %90 = vector.load %arg11[%c0_36, %c0_37] : memref<32x1xf32, #tpu.memory_space<vmem>>, vector<32x1xf32>
    %91 = vector.broadcast %90 : vector<32x1xf32> to vector<32x16xf32>
    %92 = arith.mulf %89, %91 : vector<32x16xf32>
    %cst_38 = arith.constant dense<0.000000e+00> : vector<16xf32>
    %93 = vector.multi_reduction <add>, %92, %cst_38 [0] : vector<32x16xf32> to vector<16xf32>
    %94 = vector.shape_cast %93 : vector<16xf32> to vector<1x16xf32>
    %c0_39 = arith.constant 0 : index
    %c0_40 = arith.constant 0 : index
    %95 = vector.load %arg12[%c0_39, %c0_40] : memref<1x1xf32, #tpu.memory_space<vmem>>, vector<1x1xf32>
    %96 = vector.broadcast %95 : vector<1x1xf32> to vector<1x16xf32>
    %97 = arith.addf %94, %96 : vector<1x16xf32>
    %98 = arith.mulf %97, %3 : vector<1x16xf32>
    %c0_41 = arith.constant 0 : index
    %c0_42 = arith.constant 0 : index
    %c0_43 = arith.constant 0 : index
    %99 = vector.load %arg13[%c0_41, %c0_42, %c0_43] : memref<1x1x16xf32, #tpu.memory_space<vmem>>, vector<1x1x16xf32>
    %100 = vector.shape_cast %99 : vector<1x1x16xf32> to vector<1x16xf32>
    %101 = vector.shape_cast %98 : vector<1x16xf32> to vector<1x1x16xf32>
    tpu.vector_store %arg13[%c0_41, %c0_42, %c0_43], %101 {strides = array<i32>} : memref<1x1x16xf32, #tpu.memory_space<vmem>>, vector<1x1x16xf32>,
    return
  }
  func.func @transform_0(%arg0: i32) -> (i32, i32, i32) {
    %c0_i32 = arith.constant 0 : i32
    %c0_i32_0 = arith.constant 0 : i32
    %c0_i32_1 = arith.constant 0 : i32
    return %arg0, %c0_i32, %c0_i32_0 : i32, i32, i32
  }
  func.func @transform_1(%arg0: i32) -> (i32, i32, i32) {
    %c0_i32 = arith.constant 0 : i32
    %c0_i32_0 = arith.constant 0 : i32
    %c0_i32_1 = arith.constant 0 : i32
    return %arg0, %c0_i32, %c0_i32_0 : i32, i32, i32
  }
  func.func @transform_2(%arg0: i32) -> (i32, i32) {
    %c0_i32 = arith.constant 0 : i32
    %c0_i32_0 = arith.constant 0 : i32
    %c0_i32_1 = arith.constant 0 : i32
    return %c0_i32, %c0_i32_0 : i32, i32
  }
  func.func @transform_3(%arg0: i32) -> (i32, i32) {
    %c0_i32 = arith.constant 0 : i32
    %c0_i32_0 = arith.constant 0 : i32
    %c0_i32_1 = arith.constant 0 : i32
    return %c0_i32, %c0_i32_0 : i32, i32
  }
  func.func @transform_4(%arg0: i32) -> (i32, i32) {
    %c0_i32 = arith.constant 0 : i32
    %c0_i32_0 = arith.constant 0 : i32
    %c0_i32_1 = arith.constant 0 : i32
    return %c0_i32, %c0_i32_0 : i32, i32
  }
  func.func @transform_5(%arg0: i32) -> (i32, i32) {
    %c0_i32 = arith.constant 0 : i32
    %c0_i32_0 = arith.constant 0 : i32
    %c0_i32_1 = arith.constant 0 : i32
    return %c0_i32, %c0_i32_0 : i32, i32
  }
  func.func @transform_6(%arg0: i32) -> (i32, i32) {
    %c0_i32 = arith.constant 0 : i32
    %c0_i32_0 = arith.constant 0 : i32
    %c0_i32_1 = arith.constant 0 : i32
    return %c0_i32, %c0_i32_0 : i32, i32
  }
  func.func @transform_7(%arg0: i32) -> (i32, i32) {
    %c0_i32 = arith.constant 0 : i32
    %c0_i32_0 = arith.constant 0 : i32
    %c0_i32_1 = arith.constant 0 : i32
    return %c0_i32, %c0_i32_0 : i32, i32
  }
  func.func @transform_8(%arg0: i32) -> (i32, i32) {
    %c0_i32 = arith.constant 0 : i32
    %c0_i32_0 = arith.constant 0 : i32
    %c0_i32_1 = arith.constant 0 : i32
    return %c0_i32, %c0_i32_0 : i32, i32
  }
  func.func @transform_9(%arg0: i32) -> (i32, i32) {
    %c0_i32 = arith.constant 0 : i32
    %c0_i32_0 = arith.constant 0 : i32
    %c0_i32_1 = arith.constant 0 : i32
    return %c0_i32, %c0_i32_0 : i32, i32
  }
  func.func @transform_10(%arg0: i32) -> (i32, i32) {
    %c0_i32 = arith.constant 0 : i32
    %c0_i32_0 = arith.constant 0 : i32
    %c0_i32_1 = arith.constant 0 : i32
    return %c0_i32, %c0_i32_0 : i32, i32
  }
  func.func @transform_11(%arg0: i32) -> (i32, i32) {
    %c0_i32 = arith.constant 0 : i32
    %c0_i32_0 = arith.constant 0 : i32
    %c0_i32_1 = arith.constant 0 : i32
    return %c0_i32, %c0_i32_0 : i32, i32
  }
  func.func @transform_12(%arg0: i32) -> (i32, i32, i32) {
    %c0_i32 = arith.constant 0 : i32
    %c0_i32_0 = arith.constant 0 : i32
    %c0_i32_1 = arith.constant 0 : i32
    return %arg0, %c0_i32, %c0_i32_0 : i32, i32, i32
  }
}

</mosaic_0001>

<llo_original>
// kernel: tpu_custom_call.1
$region0: #{tpu_custom_call.1}
  #allocation0 [shape = 'u32[]', space=smem, size = 0x4, offset = 0x4, fixed_abs, tag = 'smem constant byte address 0x4 - core index']
  #allocation1 [shape = 'u32[144,128]{1,0:T(1,128)}', space=vmem, size = 0x12000, scoped, tag = 'internal scratch']
  #allocation2 [shape = 'f32[1,1]{1,0:T(1,128)S(1)}', space=vmem, size = 0x200, scoped, tag = 'scoped memory for tpu_custom_call.1']
  %s0 = inlined_call_operand.vmem [shape: f32[2,16,16], index: 0, kind: input, shape index: {}]
  %s1 = inlined_call_operand.vmem [shape: f32[2,1,16], index: 1, kind: input, shape index: {}]
  %s2 = inlined_call_operand.vmem [shape: bf16[32,48], index: 2, kind: input, shape index: {}]
  %s3 = inlined_call_operand.vmem [shape: f32[32,1], index: 3, kind: input, shape index: {}]
  %s4 = inlined_call_operand.vmem [shape: f32[32,1], index: 4, kind: input, shape index: {}]
  %s5 = inlined_call_operand.vmem [shape: f32[32,1], index: 5, kind: input, shape index: {}]
  %s6 = inlined_call_operand.vmem [shape: bf16[32,96], index: 6, kind: input, shape index: {}]
  %s7 = inlined_call_operand.vmem [shape: f32[32,1], index: 7, kind: input, shape index: {}]
  %s8 = inlined_call_operand.vmem [shape: f32[32,1], index: 8, kind: input, shape index: {}]
  %s9 = inlined_call_operand.vmem [shape: f32[32,1], index: 9, kind: input, shape index: {}]
  %s10 = inlined_call_operand.vmem [shape: f32[32,1], index: 10, kind: input, shape index: {}]
  %s11 = inlined_call_operand.<no memory space> [shape: f32[1,1], index: 11, kind: input, shape index: {}]
  %s12 = inlined_call_operand.hbm [shape: f32[2,1,16], index: 12, kind: output, shape index: {}]
  %s13 = sld [smem:[#allocation0]]
  $region81: #{tpu_custom_call.1} parent=0
    _
  %s15 = ssub.s32 1, %s13
  %s16 = scalar_select 0, %s15, %s13
  %v17 = vstv %s11
  %18 = vst [vmem:[#allocation2] sm:$0x1] %v17
  $region1: #{tpu_custom_call.1} parent=0
    #allocation3 [shape = 'u8[1024]{0}', space=vmem, size = 0x400, scoped, tag = 'output window, operand 0']
    #allocation4 [shape = 's32[2]{0}', space=sflag, size = 0x8, scoped, tag = 'scoped memory for tpu_custom_call.1']
    %19 = vsyncpa [#allocation4], 0
    %s20 = scalar_lea.sflag [#allocation4], 1
    %21 = vsyncpa %s20, 0
    loop: start=0, step=1, limit=4
    $region2: #{tpu_custom_call.1} parent=1 // loop_pre_header
      _
    $region3: #{tpu_custom_call.1} parent=1 // loop_header
      %s23 = sphi 0, %s27
      %p24 = scmp.ge.s32.totalorder %s23, 4
      %s33 = sphi 0, %s35
      %s36 = sphi 0, %s33
      %s37 = sphi 0, %s36
      %s53 = sphi 0, %s37
      %s59 = sphi 0, %s61
      %s62 = sphi 0, %s59
      %s63 = sphi 0, %s62
      %s79 = sphi 0, %s63
      %s83 = sphi 0, %s83
      %s85 = sphi 0, %s83
      %s86 = sphi 0, %s85
      %s100 = sphi 0, %s86
      %s104 = sphi 0, %s104
      %s106 = sphi 0, %s104
      %s107 = sphi 0, %s106
      %s121 = sphi 0, %s107
      %s125 = sphi 0, %s125
      %s127 = sphi 0, %s125
      %s128 = sphi 0, %s127
      %s142 = sphi 0, %s128
      %s146 = sphi 0, %s146
      %s148 = sphi 0, %s146
      %s149 = sphi 0, %s148
      %s163 = sphi 0, %s149
      %s167 = sphi 0, %s167
      %s169 = sphi 0, %s167
      %s170 = sphi 0, %s169
      %s184 = sphi 0, %s170
      %s188 = sphi 0, %s188
      %s190 = sphi 0, %s188
      %s191 = sphi 0, %s190
      %s205 = sphi 0, %s191
      %s209 = sphi 0, %s209
      %s211 = sphi 0, %s209
      %s212 = sphi 0, %s211
      %s226 = sphi 0, %s212
      %s230 = sphi 0, %s230
      %s232 = sphi 0, %s230
      %s233 = sphi 0, %s232
      %s247 = sphi 0, %s233
      %s251 = sphi 0, %s251
      %s253 = sphi 0, %s251
      %s254 = sphi 0, %s253
      %s268 = sphi 0, %s254
      %s272 = sphi 0, %s272
      %s274 = sphi 0, %s272
      %s275 = sphi 0, %s274
      %s289 = sphi 0, %s275
      %s295 = sphi 0, %s297
      %s298 = sphi 0, %s295
      %s299 = sphi 0, %s298
      %s315 = sphi 0, %s299
    $region4: #{tpu_custom_call.1} parent=1 // loop_header_branch
      %26 = sbr.rel (%p24) target = $region8
    $region5: #{tpu_custom_call.1} parent=1 // loop_body
      %s28 = ssub.s32 %s23, 1
      %s29 = ssub.s32 %s23, 2
      %s30 = sadd.s32 %s23, 1
      %s31 = ssub.s32 %s23, %s30
      %p32 = scmp.eq.s32.totalorder %s31, 0
      %s34 = sadd.s32 %s33, 1
      %s35 = scalar_select %p32, %s33, %s34
      %p38 = pneg %p32
      %p39 = scmp.eq.s32.totalorder %s23, 1
      %p40 = por %p38, %p39
      %p41 = scmp.ne.s32.totalorder %s33, %s36
      %p42 = scmp.eq.s32.totalorder %s23, 0
      %p43 = por %p41, %p42
      %p44 = scmp.ne.s32.totalorder %s33, %s36
      %p45 = scmp.eq.s32.totalorder %s28, 1
      %p46 = por %p44, %p45
      %p47 = scmp.ne.s32.totalorder %s36, %s37
      %p48 = scmp.eq.s32.totalorder %s28, 0
      %p49 = por %p47, %p48
      %p50 = scmp.ne.s32.totalorder %s36, %s37
      %p51 = scmp.eq.s32.totalorder %s29, 1
      %p52 = por %p50, %p51
      %p54 = scmp.ne.s32.totalorder %s37, %s53
      %p55 = scmp.eq.s32.totalorder %s29, 0
      %p56 = por %p54, %p55
      %s57 = ssub.s32 %s23, %s30
      %p58 = scmp.eq.s32.totalorder %s57, 0
      %s60 = sadd.s32 %s59, 1
      %s61 = scalar_select %p58, %s59, %s60
      %p64 = pneg %p58
      %p65 = scmp.eq.s32.totalorder %s23, 1
      %p66 = por %p64, %p65
      %p67 = scmp.ne.s32.totalorder %s59, %s62
      %p68 = scmp.eq.s32.totalorder %s23, 0
      %p69 = por %p67, %p68
      %p70 = scmp.ne.s32.totalorder %s59, %s62
      %p71 = scmp.eq.s32.totalorder %s28, 1
      %p72 = por %p70, %p71
      %p73 = scmp.ne.s32.totalorder %s62, %s63
      %p74 = scmp.eq.s32.totalorder %s28, 0
      %p75 = por %p73, %p74
      %p76 = scmp.ne.s32.totalorder %s62, %s63
      %p77 = scmp.eq.s32.totalorder %s29, 1
      %p78 = por %p76, %p77
      %p80 = scmp.ne.s32.totalorder %s63, %s79
      %p81 = scmp.eq.s32.totalorder %s29, 0
      %p82 = por %p80, %p81
      %s84 = sadd.s32 %s83, 1
      %p87 = scmp.eq.s32.totalorder %s23, 1
      %p88 = scmp.ne.s32.totalorder %s83, %s85
      %p89 = scmp.eq.s32.totalorder %s23, 0
      %p90 = por %p88, %p89
      %p91 = scmp.ne.s32.totalorder %s83, %s85
      %p92 = scmp.eq.s32.totalorder %s28, 1
      %p93 = por %p91, %p92
      %p94 = scmp.ne.s32.totalorder %s85, %s86
      %p95 = scmp.eq.s32.totalorder %s28, 0
      %p96 = por %p94, %p95
      %p97 = scmp.ne.s32.totalorder %s85, %s86
      %p98 = scmp.eq.s32.totalorder %s29, 1
      %p99 = por %p97, %p98
      %p101 = scmp.ne.s32.totalorder %s86, %s100
      %p102 = scmp.eq.s32.totalorder %s29, 0
      %p103 = por %p101, %p102
      %s105 = sadd.s32 %s104, 1
      %p108 = scmp.eq.s32.totalorder %s23, 1
      %p109 = scmp.ne.s32.totalorder %s104, %s106
      %p110 = scmp.eq.s32.totalorder %s23, 0
      %p111 = por %p109, %p110
      %p112 = scmp.ne.s32.totalorder %s104, %s106
      %p113 = scmp.eq.s32.totalorder %s28, 1
      %p114 = por %p112, %p113
      %p115 = scmp.ne.s32.totalorder %s106, %s107
      %p116 = scmp.eq.s32.totalorder %s28, 0
      %p117 = por %p115, %p116
      %p118 = scmp.ne.s32.totalorder %s106, %s107
      %p119 = scmp.eq.s32.totalorder %s29, 1
      %p120 = por %p118, %p119
      %p122 = scmp.ne.s32.totalorder %s107, %s121
      %p123 = scmp.eq.s32.totalorder %s29, 0
      %p124 = por %p122, %p123
      %s126 = sadd.s32 %s125, 1
      %p129 = scmp.eq.s32.totalorder %s23, 1
      %p130 = scmp.ne.s32.totalorder %s125, %s127
      %p131 = scmp.eq.s32.totalorder %s23, 0
      %p132 = por %p130, %p131
      %p133 = scmp.ne.s32.totalorder %s125, %s127
      %p134 = scmp.eq.s32.totalorder %s28, 1
      %p135 = por %p133, %p134
      %p136 = scmp.ne.s32.totalorder %s127, %s128
      %p137 = scmp.eq.s32.totalorder %s28, 0
      %p138 = por %p136, %p137
      %p139 = scmp.ne.s32.totalorder %s127, %s128
      %p140 = scmp.eq.s32.totalorder %s29, 1
      %p141 = por %p139, %p140
      %p143 = scmp.ne.s32.totalorder %s128, %s142
      %p144 = scmp.eq.s32.totalorder %s29, 0
      %p145 = por %p143, %p144
      %s147 = sadd.s32 %s146, 1
      %p150 = scmp.eq.s32.totalorder %s23, 1
      %p151 = scmp.ne.s32.totalorder %s146, %s148
      %p152 = scmp.eq.s32.totalorder %s23, 0
      %p153 = por %p151, %p152
      %p154 = scmp.ne.s32.totalorder %s146, %s148
      %p155 = scmp.eq.s32.totalorder %s28, 1
      %p156 = por %p154, %p155
      %p157 = scmp.ne.s32.totalorder %s148, %s149
      %p158 = scmp.eq.s32.totalorder %s28, 0
      %p159 = por %p157, %p158
      %p160 = scmp.ne.s32.totalorder %s148, %s149
      %p161 = scmp.eq.s32.totalorder %s29, 1
      %p162 = por %p160, %p161
      %p164 = scmp.ne.s32.totalorder %s149, %s163
      %p165 = scmp.eq.s32.totalorder %s29, 0
      %p166 = por %p164, %p165
      %s168 = sadd.s32 %s167, 1
      %p171 = scmp.eq.s32.totalorder %s23, 1
      %p172 = scmp.ne.s32.totalorder %s167, %s169
      %p173 = scmp.eq.s32.totalorder %s23, 0
      %p174 = por %p172, %p173
      %p175 = scmp.ne.s32.totalorder %s167, %s169
      %p176 = scmp.eq.s32.totalorder %s28, 1
      %p177 = por %p175, %p176
      %p178 = scmp.ne.s32.totalorder %s169, %s170
      %p179 = scmp.eq.s32.totalorder %s28, 0
      %p180 = por %p178, %p179
      %p181 = scmp.ne.s32.totalorder %s169, %s170
      %p182 = scmp.eq.s32.totalorder %s29, 1
      %p183 = por %p181, %p182
      %p185 = scmp.ne.s32.totalorder %s170, %s184
      %p186 = scmp.eq.s32.totalorder %s29, 0
      %p187 = por %p185, %p186
      %s189 = sadd.s32 %s188, 1
      %p192 = scmp.eq.s32.totalorder %s23, 1
      %p193 = scmp.ne.s32.totalorder %s188, %s190
      %p194 = scmp.eq.s32.totalorder %s23, 0
      %p195 = por %p193, %p194
      %p196 = scmp.ne.s32.totalorder %s188, %s190
      %p197 = scmp.eq.s32.totalorder %s28, 1
      %p198 = por %p196, %p197
      %p199 = scmp.ne.s32.totalorder %s190, %s191
      %p200 = scmp.eq.s32.totalorder %s28, 0
      %p201 = por %p199, %p200
      %p202 = scmp.ne.s32.totalorder %s190, %s191
      %p203 = scmp.eq.s32.totalorder %s29, 1
      %p204 = por %p202, %p203
      %p206 = scmp.ne.s32.totalorder %s191, %s205
      %p207 = scmp.eq.s32.totalorder %s29, 0
      %p208 = por %p206, %p207
      %s210 = sadd.s32 %s209, 1
      %p213 = scmp.eq.s32.totalorder %s23, 1
      %p214 = scmp.ne.s32.totalorder %s209, %s211
      %p215 = scmp.eq.s32.totalorder %s23, 0
      %p216 = por %p214, %p215
      %p217 = scmp.ne.s32.totalorder %s209, %s211
      %p218 = scmp.eq.s32.totalorder %s28, 1
      %p219 = por %p217, %p218
      %p220 = scmp.ne.s32.totalorder %s211, %s212
      %p221 = scmp.eq.s32.totalorder %s28, 0
      %p222 = por %p220, %p221
      %p223 = scmp.ne.s32.totalorder %s211, %s212
      %p224 = scmp.eq.s32.totalorder %s29, 1
      %p225 = por %p223, %p224
      %p227 = scmp.ne.s32.totalorder %s212, %s226
      %p228 = scmp.eq.s32.totalorder %s29, 0
      %p229 = por %p227, %p228
      %s231 = sadd.s32 %s230, 1
      %p234 = scmp.eq.s32.totalorder %s23, 1
      %p235 = scmp.ne.s32.totalorder %s230, %s232
      %p236 = scmp.eq.s32.totalorder %s23, 0
      %p237 = por %p235, %p236
      %p238 = scmp.ne.s32.totalorder %s230, %s232
      %p239 = scmp.eq.s32.totalorder %s28, 1
      %p240 = por %p238, %p239
      %p241 = scmp.ne.s32.totalorder %s232, %s233
      %p242 = scmp.eq.s32.totalorder %s28, 0
      %p243 = por %p241, %p242
      %p244 = scmp.ne.s32.totalorder %s232, %s233
      %p245 = scmp.eq.s32.totalorder %s29, 1
      %p246 = por %p244, %p245
      %p248 = scmp.ne.s32.totalorder %s233, %s247
      %p249 = scmp.eq.s32.totalorder %s29, 0
      %p250 = por %p248, %p249
      %s252 = sadd.s32 %s251, 1
      %p255 = scmp.eq.s32.totalorder %s23, 1
      %p256 = scmp.ne.s32.totalorder %s251, %s253
      %p257 = scmp.eq.s32.totalorder %s23, 0
      %p258 = por %p256, %p257
      %p259 = scmp.ne.s32.totalorder %s251, %s253
      %p260 = scmp.eq.s32.totalorder %s28, 1
      %p261 = por %p259, %p260
      %p262 = scmp.ne.s32.totalorder %s253, %s254
      %p263 = scmp.eq.s32.totalorder %s28, 0
      %p264 = por %p262, %p263
      %p265 = scmp.ne.s32.totalorder %s253, %s254
      %p266 = scmp.eq.s32.totalorder %s29, 1
      %p267 = por %p265, %p266
      %p269 = scmp.ne.s32.totalorder %s254, %s268
      %p270 = scmp.eq.s32.totalorder %s29, 0
      %p271 = por %p269, %p270
      %s273 = sadd.s32 %s272, 1
      %p276 = scmp.eq.s32.totalorder %s23, 1
      %p277 = scmp.ne.s32.totalorder %s272, %s274
      %p278 = scmp.eq.s32.totalorder %s23, 0
      %p279 = por %p277, %p278
      %p280 = scmp.ne.s32.totalorder %s272, %s274
      %p281 = scmp.eq.s32.totalorder %s28, 1
      %p282 = por %p280, %p281
      %p283 = scmp.ne.s32.totalorder %s274, %s275
      %p284 = scmp.eq.s32.totalorder %s28, 0
      %p285 = por %p283, %p284
      %p286 = scmp.ne.s32.totalorder %s274, %s275
      %p287 = scmp.eq.s32.totalorder %s29, 1
      %p288 = por %p286, %p287
      %p290 = scmp.ne.s32.totalorder %s275, %s289
      %p291 = scmp.eq.s32.totalorder %s29, 0
      %p292 = por %p290, %p291
      %s293 = ssub.s32 %s23, %s30
      %p294 = scmp.eq.s32.totalorder %s293, 0
      %s296 = sadd.s32 %s295, 1
      %s297 = scalar_select %p294, %s295, %s296
      %p300 = pneg %p294
      %p301 = scmp.eq.s32.totalorder %s23, 1
      %p302 = por %p300, %p301
      %p303 = scmp.ne.s32.totalorder %s295, %s298
      %p304 = scmp.eq.s32.totalorder %s23, 0
      %p305 = por %p303, %p304
      %p306 = scmp.ne.s32.totalorder %s295, %s298
      %p307 = scmp.eq.s32.totalorder %s28, 1
      %p308 = por %p306, %p307
      %p309 = scmp.ne.s32.totalorder %s298, %s299
      %p310 = scmp.eq.s32.totalorder %s28, 0
      %p311 = por %p309, %p310
      %p312 = scmp.ne.s32.totalorder %s298, %s299
      %p313 = scmp.eq.s32.totalorder %s29, 1
      %p314 = por %p312, %p313
      %p316 = scmp.ne.s32.totalorder %s299, %s315
      %p317 = scmp.eq.s32.totalorder %s29, 0
      %p318 = por %p316, %p317
      %p319 = scmp.le.s32.totalorder 1, %s23
      %p320 = scmp.lt.s32.totalorder %s23, 3
      %p321 = pnand %p319, %p320
      %p322 = pneg %p321
      // Predicated region
      $region9: #{tpu_custom_call.1} parent=5 // pred_check
        _
      $region10: #{tpu_custom_call.1} parent=5 // pred_check_branch
        %324 = sbr.rel (%p321) target = $region12
      $region11: #{tpu_custom_call.1} parent=5 // pred_region
        %s325 = ssub.s32 %s23, 1
        // Predicated region
        $region13: #{tpu_custom_call.1} parent=11 // pred_check
          %p326 = pneg %p96
        $region14: #{tpu_custom_call.1} parent=11 // pred_check_branch
          %328 = sbr.rel (%p326) target = $region16
        $region15: #{tpu_custom_call.1} parent=11 // pred_region
          _
        $region16: #{tpu_custom_call.1} parent=11 // pred_fallthru
          _
        // Predicated region
        $region17: #{tpu_custom_call.1} parent=11 // pred_check
          %p329 = pneg %p117
        $region18: #{tpu_custom_call.1} parent=11 // pred_check_branch
          %331 = sbr.rel (%p329) target = $region20
        $region19: #{tpu_custom_call.1} parent=11 // pred_region
          _
        $region20: #{tpu_custom_call.1} parent=11 // pred_fallthru
          _
        // Predicated region
        $region21: #{tpu_custom_call.1} parent=11 // pred_check
          %p332 = pneg %p138
        $region22: #{tpu_custom_call.1} parent=11 // pred_check_branch
          %334 = sbr.rel (%p332) target = $region24
        $region23: #{tpu_custom_call.1} parent=11 // pred_region
          _
        $region24: #{tpu_custom_call.1} parent=11 // pred_fallthru
          _
        // Predicated region
        $region25: #{tpu_custom_call.1} parent=11 // pred_check
          %p335 = pneg %p159
        $region26: #{tpu_custom_call.1} parent=11 // pred_check_branch
          %337 = sbr.rel (%p335) target = $region28
        $region27: #{tpu_custom_call.1} parent=11 // pred_region
          _
        $region28: #{tpu_custom_call.1} parent=11 // pred_fallthru
          _
        // Predicated region
        $region29: #{tpu_custom_call.1} parent=11 // pred_check
          %p338 = pneg %p180
        $region30: #{tpu_custom_call.1} parent=11 // pred_check_branch
          %340 = sbr.rel (%p338) target = $region32
        $region31: #{tpu_custom_call.1} parent=11 // pred_region
          _
        $region32: #{tpu_custom_call.1} parent=11 // pred_fallthru
          _
        // Predicated region
        $region33: #{tpu_custom_call.1} parent=11 // pred_check
          %p341 = pneg %p201
        $region34: #{tpu_custom_call.1} parent=11 // pred_check_branch
          %343 = sbr.rel (%p341) target = $region36
        $region35: #{tpu_custom_call.1} parent=11 // pred_region
          _
        $region36: #{tpu_custom_call.1} parent=11 // pred_fallthru
          _
        // Predicated region
        $region37: #{tpu_custom_call.1} parent=11 // pred_check
          %p344 = pneg %p222
        $region38: #{tpu_custom_call.1} parent=11 // pred_check_branch
          %346 = sbr.rel (%p344) target = $region40
        $region39: #{tpu_custom_call.1} parent=11 // pred_region
          _
        $region40: #{tpu_custom_call.1} parent=11 // pred_fallthru
          _
        // Predicated region
        $region41: #{tpu_custom_call.1} parent=11 // pred_check
          %p347 = pneg %p243
        $region42: #{tpu_custom_call.1} parent=11 // pred_check_branch
          %349 = sbr.rel (%p347) target = $region44
        $region43: #{tpu_custom_call.1} parent=11 // pred_region
          _
        $region44: #{tpu_custom_call.1} parent=11 // pred_fallthru
          _
        // Predicated region
        $region45: #{tpu_custom_call.1} parent=11 // pred_check
          %p350 = pneg %p264
        $region46: #{tpu_custom_call.1} parent=11 // pred_check_branch
          %352 = sbr.rel (%p350) target = $region48
        $region47: #{tpu_custom_call.1} parent=11 // pred_region
          _
        $region48: #{tpu_custom_call.1} parent=11 // pred_fallthru
          _
        // Predicated region
        $region49: #{tpu_custom_call.1} parent=11 // pred_check
          %p353 = pneg %p285
        $region50: #{tpu_custom_call.1} parent=11 // pred_check_branch
          %355 = sbr.rel (%p353) target = $region52
        $region51: #{tpu_custom_call.1} parent=11 // pred_region
          _
        $region52: #{tpu_custom_call.1} parent=11 // pred_fallthru
          _
      $region12: #{tpu_custom_call.1} parent=5 // pred_fallthru
        _
      %p356 = scmp.lt.s32.totalorder %s23, 2
      // Predicated region
      $region53: #{tpu_custom_call.1} parent=5 // pred_check
        %p357 = pneg %p356
      $region54: #{tpu_custom_call.1} parent=5 // pred_check_branch
        %359 = sbr.rel (%p357) target = $region56
      $region55: #{tpu_custom_call.1} parent=5 // pred_region
        // Predicated region
        $region57: #{tpu_custom_call.1} parent=55 // pred_check
          %p360 = pneg %p43
        $region58: #{tpu_custom_call.1} parent=55 // pred_check_branch
          %362 = sbr.rel (%p360) target = $region60
        $region59: #{tpu_custom_call.1} parent=55 // pred_region
          %p363 = scmp.lt.s32.totalorder %s23, 1
          %s364 = scalar_select %p363, %s23, 1
          %s365 = smul.addr %s364, 2
          %s366 = smul.addr %s365, 8
          %s367 = scalar_lea.vmem %s0, %s366
        $region60: #{tpu_custom_call.1} parent=55 // pred_fallthru
          _
        // Predicated region
        $region61: #{tpu_custom_call.1} parent=55 // pred_check
          %p368 = pneg %p69
        $region62: #{tpu_custom_call.1} parent=55 // pred_check_branch
          %370 = sbr.rel (%p368) target = $region64
        $region63: #{tpu_custom_call.1} parent=55 // pred_region
          %p371 = scmp.lt.s32.totalorder %s23, 1
          %s372 = scalar_select %p371, %s23, 1
          %s373 = scalar_lea.vmem %s1, %s372
        $region64: #{tpu_custom_call.1} parent=55 // pred_fallthru
          _
      $region56: #{tpu_custom_call.1} parent=5 // pred_fallthru
        _
      %p374 = scmp.le.s32.totalorder 1, %s23
      %p375 = scmp.lt.s32.totalorder %s23, 3
      %p376 = pnand %p374, %p375
      %p377 = pneg %p376
      // Predicated region
      $region65: #{tpu_custom_call.1} parent=5 // pred_check
        _
      $region66: #{tpu_custom_call.1} parent=5 // pred_check_branch
        %379 = sbr.rel (%p376) target = $region68
      $region67: #{tpu_custom_call.1} parent=5 // pred_region
        %s380 = ssub.s32 %s23, 1
        %p381 = scmp.lt.s32.totalorder %s28, 1
        %s382 = scalar_select %p381, %s28, 1
        %s383 = smul.addr %s382, 2
        %s384 = smul.addr %s383, 8
        %s385 = scalar_lea.vmem %s0, %s384
        %p386 = pneg %p49
        %p387 = pneg %p46
        %p388 = scmp.lt.s32.totalorder %s28, 1
        %s389 = scalar_select %p388, %s28, 1
        %s390 = scalar_lea.vmem %s1, %s389
        %p391 = pneg %p75
        %p392 = pneg %p72
        %p393 = pneg %p96
        %p394 = pneg %p93
        %p395 = pneg %p117
        %p396 = pneg %p114
        %p397 = pneg %p138
        %p398 = pneg %p135
        %p399 = pneg %p159
        %p400 = pneg %p156
        %p401 = pneg %p180
        %p402 = pneg %p177
        %p403 = pneg %p201
        %p404 = pneg %p198
        %p405 = pneg %p222
        %p406 = pneg %p219
        %p407 = pneg %p243
        %p408 = pneg %p240
        %p409 = pneg %p264
        %p410 = pneg %p261
        %p411 = pneg %p285
        %p412 = pneg %p282
        %p413 = pneg %p311
        %p414 = pneg %p308
        %s415 = sand.u32 %s298, 1
        %s416 = scalar_lea.sflag [#allocation4], %s415
        %s417 = sand.u32 %s298, 1
        %s418 = scalar_lea.vmem [#allocation3], %s417
        %p419 = scmp.lt.s32.totalorder %s28, 1
        %s420 = scalar_select %p419, %s28, 1
        %s421 = smul.addr %s420, 2
        %s422 = smul.addr %s421, 8
        %s423 = scalar_lea.vmem %s0, %s422
        %p424 = scmp.lt.s32.totalorder %s28, 1
        %s425 = scalar_select %p424, %s28, 1
        %s426 = scalar_lea.vmem %s1, %s425
        %v428 = vld [vmem:[%s423] sm:$0xff]
        %v429 = vld [vmem:[%s423 + $0x8] sm:$0xff]
        %v430 = vld [vmem:[%s426] sm:$0x1]
        %v432 = vlaneseq
        %v433 = vshrl.u32 %v432, 7
        %v434 = vsub.s32 0, %v433
        %v435 = vrot.slane %v430, %v434
        %v437 = vmul.f32 %v428, %v435
        %v438 = vmul.f32 %v429, %v435
        %441 = vrot.lane.b32.xlu0 %v437, 1
        %v442 = vpop.permute.xlu0 %441
        %443 = vrot.lane.b32.xlu0 %v438, 1
        %v444 = vpop.permute.xlu0 %443
        %vm447 = vcmask 7168
        %v448 = vsel %vm447, 0.0, %v442
        %v449 = vsel %vm447, 0.0, %v444
        %vm450 = vcmask 138240
        %v451 = vsel %vm450, %v448, 0.0
        %v452 = vsel %vm450, %v449, 0.0
        %455 = vrot.lane.b32.xlu0 %v451, 127
        %v456 = vpop.permute.xlu0 %455
        %457 = vrot.lane.b32.xlu0 %v452, 127
        %v458 = vpop.permute.xlu0 %457
        %461 = vrot.lane.b32.xlu0 %v451, 126
        %v462 = vpop.permute.xlu0 %461
        %463 = vrot.lane.b32.xlu0 %v452, 126
        %v464 = vpop.permute.xlu0 %463
        %v467 = vpack.c.bf16 %v452, %v451
        %v468 = vpack.c.bf16 %v458, %v456
        %v469 = vpack.c.bf16 %v464, %v462
        %v470 = vld [vmem:[%s2] sm:$0xf]
        %v471 = vld [vmem:[%s2 + $0x4] sm:$0xf]
        %v472 = vld [vmem:[%s2 + $0x8] sm:$0xf]
        %v473 = vld [vmem:[%s2 + $0xc] sm:$0xf]
        %v474 = vld [vmem:[%s3] sm:$0xff]
        %v475 = vld [vmem:[%s3 + $0x8] sm:$0xff]
        %v476 = vld [vmem:[%s3 + $0x10] sm:$0xff]
        %v477 = vld [vmem:[%s3 + $0x18] sm:$0xff]
        %479 = vset.pattern.permute.xlu0 0
        %480 = vperm.xlu0 %479, %v474
        %v481 = vpop.permute.xlu0 %480
        %484 = vset.pattern.permute.xlu0 0
        %485 = vperm.xlu0 %484, %v475
        %v486 = vpop.permute.xlu0 %485
        %489 = vset.pattern.permute.xlu0 0
        %490 = vperm.xlu0 %489, %v476
        %v491 = vpop.permute.xlu0 %490
        %494 = vset.pattern.permute.xlu0 0
        %495 = vperm.xlu0 %494, %v477
        %v496 = vpop.permute.xlu0 %495
        %v502 = vunpack.c.l.b16 %v470
        %v503 = vunpack.c.l.b16 %v471
        %v504 = vunpack.c.l.b16 %v472
        %v505 = vunpack.c.l.b16 %v473
        %v506 = vpack.c.b16 %v503, %v502
        %v507 = vpack.c.b16 %v505, %v504
        %vm508 = vcmask 392192
        %v510 = vsel %vm508, %v506, 0
        %v513 = vsel %vm508, %v507, 0
        %515 = vmatprep.subr.bf16.mxu0 0
        %516 = vmatpush1.bf16.msra.mxu0 %v467
        %517 = vmatprep.subr.bf16.mxu0 0
        %518 = vmatpush1.bf16.msra.mxu0 %v468
        %519 = vmatprep.subr.bf16.mxu0 0
        %520 = vmatpush1.bf16.msra.mxu0 %v469
        %521 = vmatprep.subr.bf16.mxu0 0
        %522 = vmatpush1.bf16.msra.mxu0 0
        %523 = vmatprep.subr.bf16.mxu0 0
        %524 = vmatpush1.bf16.msra.mxu0 0
        %525 = vmatprep.subr.bf16.mxu0 0
        %526 = vmatpush1.bf16.msra.mxu0 0
        %527 = vmatprep.subr.bf16.mxu0 0
        %528 = vmatpush1.bf16.msra.mxu0 0
        %529 = vmatprep.subr.bf16.mxu0 0
        %530 = vmatpush1.bf16.msra.mxu0 0
        %531 = vmatprep.subr.bf16.mxu0 0
        %532 = vmatpush1.bf16.msra.mxu0 0
        %533 = vmatprep.subr.bf16.mxu0 0
        %534 = vmatpush1.bf16.msra.mxu0 0
        %535 = vmatprep.subr.bf16.mxu0 0
        %536 = vmatpush1.bf16.msra.mxu0 0
        %537 = vmatprep.subr.bf16.mxu0 0
        %538 = vmatpush1.bf16.msra.mxu0 0
        %539 = vmatprep.subr.bf16.mxu0 0
        %540 = vmatpush1.bf16.msra.mxu0 0
        %541 = vmatprep.subr.bf16.mxu0 0
        %542 = vmatpush1.bf16.msra.mxu0 0
        %543 = vmatprep.subr.bf16.mxu0 0
        %544 = vmatpush1.bf16.msra.mxu0 0
        %545 = vmatprep.subr.bf16.mxu0 0
        %546 = vmatpush1.bf16.msra.mxu0 0
        %547 = vmatprep.mubr.bf16.mxu0 0
        %548 = vmatmul.mubr.bf16.gmra.mrb[0].mxu0 %v510
        %v549 = vpop.f32.mrb[0].mxu0
        %v550 = vadd.f32 %v481, %v549
        %v551 = vpop.f32.mrb[0].mxu0
        %v552 = vpop.f32.mrb[0].mxu0
        %v553 = vadd.f32 %v486, %v552
        %v554 = vpop.f32.mrb[0].mxu0
        %555 = vmatprep.mubr.bf16.mxu0 0
        %556 = vmatmul.mubr.bf16.gmra.mrb[0].mxu0 %v513
        %v557 = vpop.f32.mrb[0].mxu0
        %v558 = vadd.f32 %v491, %v557
        %v559 = vpop.f32.mrb[0].mxu0
        %v560 = vpop.f32.mrb[0].mxu0
        %v561 = vadd.f32 %v496, %v560
        %v562 = vpop.f32.mrb[0].mxu0
        %563 = vdwg.mxu0
        %v564 = vmax.f32 %v550, 0.0
        %v565 = vmax.f32 %v553, 0.0
        %v566 = vmax.f32 %v558, 0.0
        %v567 = vmax.f32 %v561, 0.0
        %vm568 = vcmask 130048
        %v569 = vsel %vm568, %v564, 0.0
        %v570 = vsel %vm568, %v565, 0.0
        %v571 = vadd.f32 %v569, %v570
        %v572 = vsel %vm568, %v566, 0.0
        %v573 = vadd.f32 %v571, %v572
        %v574 = vsel %vm568, %v567, 0.0
        %v575 = vadd.f32 %v573, %v574
        %v576 = vrot.slane %v575, 4
        %v577 = vadd.f32 %v575, %v576
        %v578 = vrot.slane %v577, 2
        %v579 = vadd.f32 %v577, %v578
        %v580 = vrot.slane %v579, 1
        %v581 = vadd.f32 %v579, %v580
        %v582 = vrcp.pop 32.0
        %v583 = vmul.f32 %v581, %v582
        %v584 = vsub.f32 %v564, %v583
        %v585 = vsub.f32 %v565, %v583
        %v586 = vsub.f32 %v566, %v583
        %v587 = vsub.f32 %v567, %v583
        %v588 = vmul.f32 %v584, %v584
        %v589 = vmul.f32 %v585, %v585
        %v590 = vmul.f32 %v586, %v586
        %v591 = vmul.f32 %v587, %v587
        %v592 = vsel %vm568, %v588, 0.0
        %v593 = vsel %vm568, %v589, 0.0
        %v594 = vadd.f32 %v592, %v593
        %v595 = vsel %vm568, %v590, 0.0
        %v596 = vadd.f32 %v594, %v595
        %v597 = vsel %vm568, %v591, 0.0
        %v598 = vadd.f32 %v596, %v597
        %v599 = vrot.slane %v598, 4
        %v600 = vadd.f32 %v598, %v599
        %v601 = vrot.slane %v600, 2
        %v602 = vadd.f32 %v600, %v601
        %v603 = vrot.slane %v602, 1
        %v604 = vadd.f32 %v602, %v603
        %v605 = vmul.f32 %v604, %v582
        %v606 = vadd.f32 %v605, 1e-05
        %v607 = vrsqrt.pop %v606
        %v608 = vmul.f32 %v584, %v607
        %v609 = vmul.f32 %v585, %v607
        %v610 = vmul.f32 %v586, %v607
        %v611 = vmul.f32 %v587, %v607
        %v612 = vld [vmem:[%s4] sm:$0xff]
        %v613 = vld [vmem:[%s4 + $0x8] sm:$0xff]
        %v614 = vld [vmem:[%s4 + $0x10] sm:$0xff]
        %v615 = vld [vmem:[%s4 + $0x18] sm:$0xff]
        %617 = vset.pattern.permute.xlu0 0
        %618 = vperm.xlu0 %617, %v612
        %v619 = vpop.permute.xlu0 %618
        %622 = vset.pattern.permute.xlu0 0
        %623 = vperm.xlu0 %622, %v613
        %v624 = vpop.permute.xlu0 %623
        %627 = vset.pattern.permute.xlu0 0
        %628 = vperm.xlu0 %627, %v614
        %v629 = vpop.permute.xlu0 %628
        %632 = vset.pattern.permute.xlu0 0
        %633 = vperm.xlu0 %632, %v615
        %v634 = vpop.permute.xlu0 %633
        %v636 = vmul.f32 %v608, %v619
        %v637 = vmul.f32 %v609, %v624
        %v638 = vmul.f32 %v610, %v629
        %v639 = vmul.f32 %v611, %v634
        %v640 = vld [vmem:[%s5] sm:$0xff]
        %v641 = vld [vmem:[%s5 + $0x8] sm:$0xff]
        %v642 = vld [vmem:[%s5 + $0x10] sm:$0xff]
        %v643 = vld [vmem:[%s5 + $0x18] sm:$0xff]
        %645 = vset.pattern.permute.xlu0 0
        %646 = vperm.xlu0 %645, %v640
        %v647 = vpop.permute.xlu0 %646
        %650 = vset.pattern.permute.xlu0 0
        %651 = vperm.xlu0 %650, %v641
        %v652 = vpop.permute.xlu0 %651
        %655 = vset.pattern.permute.xlu0 0
        %656 = vperm.xlu0 %655, %v642
        %v657 = vpop.permute.xlu0 %656
        %660 = vset.pattern.permute.xlu0 0
        %661 = vperm.xlu0 %660, %v643
        %v662 = vpop.permute.xlu0 %661
        %v664 = vadd.f32 %v636, %v647
        %v665 = vadd.f32 %v637, %v652
        %v666 = vadd.f32 %v638, %v657
        %v667 = vadd.f32 %v639, %v662
        %v668 = vmul.f32 %v664, %v435
        %v669 = vmul.f32 %v665, %v435
        %v670 = vmul.f32 %v666, %v435
        %v671 = vmul.f32 %v667, %v435
        %676 = vrot.lane.b32.xlu0 %v668, 1
        %v677 = vpop.permute.xlu0 %676
        %678 = vrot.lane.b32.xlu0 %v669, 1
        %v679 = vpop.permute.xlu0 %678
        %680 = vrot.lane.b32.xlu0 %v670, 1
        %v681 = vpop.permute.xlu0 %680
        %682 = vrot.lane.b32.xlu0 %v671, 1
        %v683 = vpop.permute.xlu0 %682
        %v688 = vsel %vm447, 0.0, %v677
        %v689 = vsel %vm447, 0.0, %v679
        %v690 = vsel %vm447, 0.0, %v681
        %v691 = vsel %vm447, 0.0, %v683
        %v692 = vsel %vm450, %v688, 0.0
        %v693 = vsel %vm450, %v689, 0.0
        %v694 = vsel %vm450, %v690, 0.0
        %v695 = vsel %vm450, %v691, 0.0
        %700 = vrot.lane.b32.xlu0 %v692, 127
        %v701 = vpop.permute.xlu0 %700
        %702 = vrot.lane.b32.xlu0 %v693, 127
        %v703 = vpop.permute.xlu0 %702
        %704 = vrot.lane.b32.xlu0 %v694, 127
        %v705 = vpop.permute.xlu0 %704
        %706 = vrot.lane.b32.xlu0 %v695, 127
        %v707 = vpop.permute.xlu0 %706
        %712 = vrot.lane.b32.xlu0 %v692, 126
        %v713 = vpop.permute.xlu0 %712
        %714 = vrot.lane.b32.xlu0 %v693, 126
        %v715 = vpop.permute.xlu0 %714
        %716 = vrot.lane.b32.xlu0 %v694, 126
        %v717 = vpop.permute.xlu0 %716
        %718 = vrot.lane.b32.xlu0 %v695, 126
        %v719 = vpop.permute.xlu0 %718
        %v724 = vpack.c.bf16 %v693, %v692
        %v725 = vpack.c.bf16 %v695, %v694
        %v726 = vpack.c.bf16 %v703, %v701
        %v727 = vpack.c.bf16 %v707, %v705
        %v728 = vpack.c.bf16 %v715, %v713
        %v729 = vpack.c.bf16 %v719, %v717
        %v730 = vld [vmem:[%s6] sm:$0xf]
        %v731 = vld [vmem:[%s6 + $0x4] sm:$0xf]
        %v732 = vld [vmem:[%s6 + $0x8] sm:$0xf]
        %v733 = vld [vmem:[%s6 + $0xc] sm:$0xf]
        %v734 = vld [vmem:[%s7] sm:$0xff]
        %v735 = vld [vmem:[%s7 + $0x8] sm:$0xff]
        %v736 = vld [vmem:[%s7 + $0x10] sm:$0xff]
        %v737 = vld [vmem:[%s7 + $0x18] sm:$0xff]
        %739 = vset.pattern.permute.xlu0 0
        %740 = vperm.xlu0 %739, %v734
        %v741 = vpop.permute.xlu0 %740
        %744 = vset.pattern.permute.xlu0 0
        %745 = vperm.xlu0 %744, %v735
        %v746 = vpop.permute.xlu0 %745
        %749 = vset.pattern.permute.xlu0 0
        %750 = vperm.xlu0 %749, %v736
        %v751 = vpop.permute.xlu0 %750
        %754 = vset.pattern.permute.xlu0 0
        %755 = vperm.xlu0 %754, %v737
        %v756 = vpop.permute.xlu0 %755
        %v762 = vunpack.c.l.b16 %v730
        %v763 = vunpack.c.l.b16 %v731
        %v764 = vunpack.c.l.b16 %v732
        %v765 = vunpack.c.l.b16 %v733
        %v766 = vpack.c.b16 %v763, %v762
        %v767 = vpack.c.b16 %v765, %v764
        %vm768 = vcmask 785408
        %v770 = vsel %vm768, %v766, 0
        %v773 = vsel %vm768, %v767, 0
        %775 = vmatprep.subr.bf16.mxu0 0
        %776 = vmatpush1.bf16.msra.mxu0 %v724
        %777 = vmatprep.subr.bf16.mxu0 0
        %778 = vmatpush1.bf16.msra.mxu0 %v725
        %779 = vmatprep.subr.bf16.mxu0 0
        %780 = vmatpush1.bf16.msra.mxu0 %v726
        %781 = vmatprep.subr.bf16.mxu0 0
        %782 = vmatpush1.bf16.msra.mxu0 %v727
        %783 = vmatprep.subr.bf16.mxu0 0
        %784 = vmatpush1.bf16.msra.mxu0 %v728
        %785 = vmatprep.subr.bf16.mxu0 0
        %786 = vmatpush1.bf16.msra.mxu0 %v729
        %787 = vmatprep.subr.bf16.mxu0 0
        %788 = vmatpush1.bf16.msra.mxu0 0
        %789 = vmatprep.subr.bf16.mxu0 0
        %790 = vmatpush1.bf16.msra.mxu0 0
        %791 = vmatprep.subr.bf16.mxu0 0
        %792 = vmatpush1.bf16.msra.mxu0 0
        %793 = vmatprep.subr.bf16.mxu0 0
        %794 = vmatpush1.bf16.msra.mxu0 0
        %795 = vmatprep.subr.bf16.mxu0 0
        %796 = vmatpush1.bf16.msra.mxu0 0
        %797 = vmatprep.subr.bf16.mxu0 0
        %798 = vmatpush1.bf16.msra.mxu0 0
        %799 = vmatprep.subr.bf16.mxu0 0
        %800 = vmatpush1.bf16.msra.mxu0 0
        %801 = vmatprep.subr.bf16.mxu0 0
        %802 = vmatpush1.bf16.msra.mxu0 0
        %803 = vmatprep.subr.bf16.mxu0 0
        %804 = vmatpush1.bf16.msra.mxu0 0
        %805 = vmatprep.subr.bf16.mxu0 0
        %806 = vmatpush1.bf16.msra.mxu0 0
        %807 = vmatprep.mubr.bf16.mxu0 0
        %808 = vmatmul.mubr.bf16.gmra.mrb[0].mxu0 %v770
        %v809 = vpop.f32.mrb[0].mxu0
        %v810 = vadd.f32 %v741, %v809
        %v811 = vpop.f32.mrb[0].mxu0
        %v812 = vpop.f32.mrb[0].mxu0
        %v813 = vadd.f32 %v746, %v812
        %v814 = vpop.f32.mrb[0].mxu0
        %815 = vmatprep.mubr.bf16.mxu0 0
        %816 = vmatmul.mubr.bf16.gmra.mrb[0].mxu0 %v773
        %v817 = vpop.f32.mrb[0].mxu0
        %v818 = vadd.f32 %v751, %v817
        %v819 = vpop.f32.mrb[0].mxu0
        %v820 = vpop.f32.mrb[0].mxu0
        %v821 = vadd.f32 %v756, %v820
        %v822 = vpop.f32.mrb[0].mxu0
        %823 = vdwg.mxu0
        %v824 = vmax.f32 %v810, 0.0
        %v825 = vmax.f32 %v813, 0.0
        %v826 = vmax.f32 %v818, 0.0
        %v827 = vmax.f32 %v821, 0.0
        %v828 = vsel %vm568, %v824, 0.0
        %v829 = vsel %vm568, %v825, 0.0
        %v830 = vadd.f32 %v828, %v829
        %v831 = vsel %vm568, %v826, 0.0
        %v832 = vadd.f32 %v830, %v831
        %v833 = vsel %vm568, %v827, 0.0
        %v834 = vadd.f32 %v832, %v833
        %v835 = vrot.slane %v834, 4
        %v836 = vadd.f32 %v834, %v835
        %v837 = vrot.slane %v836, 2
        %v838 = vadd.f32 %v836, %v837
        %v839 = vrot.slane %v838, 1
        %v840 = vadd.f32 %v838, %v839
        %v841 = vmul.f32 %v840, %v582
        %v842 = vsub.f32 %v824, %v841
        %v843 = vsub.f32 %v825, %v841
        %v844 = vsub.f32 %v826, %v841
        %v845 = vsub.f32 %v827, %v841
        %v846 = vmul.f32 %v842, %v842
        %v847 = vmul.f32 %v843, %v843
        %v848 = vmul.f32 %v844, %v844
        %v849 = vmul.f32 %v845, %v845
        %v850 = vsel %vm568, %v846, 0.0
        %v851 = vsel %vm568, %v847, 0.0
        %v852 = vadd.f32 %v850, %v851
        %v853 = vsel %vm568, %v848, 0.0
        %v854 = vadd.f32 %v852, %v853
        %v855 = vsel %vm568, %v849, 0.0
        %v856 = vadd.f32 %v854, %v855
        %v857 = vrot.slane %v856, 4
        %v858 = vadd.f32 %v856, %v857
        %v859 = vrot.slane %v858, 2
        %v860 = vadd.f32 %v858, %v859
        %v861 = vrot.slane %v860, 1
        %v862 = vadd.f32 %v860, %v861
        %v863 = vmul.f32 %v862, %v582
        %v864 = vadd.f32 %v863, 1e-05
        %v865 = vrsqrt.pop %v864
        %v866 = vmul.f32 %v842, %v865
        %v867 = vmul.f32 %v843, %v865
        %v868 = vmul.f32 %v844, %v865
        %v869 = vmul.f32 %v845, %v865
        %v870 = vld [vmem:[%s8] sm:$0xff]
        %v871 = vld [vmem:[%s8 + $0x8] sm:$0xff]
        %v872 = vld [vmem:[%s8 + $0x10] sm:$0xff]
        %v873 = vld [vmem:[%s8 + $0x18] sm:$0xff]
        %875 = vset.pattern.permute.xlu0 0
        %876 = vperm.xlu0 %875, %v870
        %v877 = vpop.permute.xlu0 %876
        %880 = vset.pattern.permute.xlu0 0
        %881 = vperm.xlu0 %880, %v871
        %v882 = vpop.permute.xlu0 %881
        %885 = vset.pattern.permute.xlu0 0
        %886 = vperm.xlu0 %885, %v872
        %v887 = vpop.permute.xlu0 %886
        %890 = vset.pattern.permute.xlu0 0
        %891 = vperm.xlu0 %890, %v873
        %v892 = vpop.permute.xlu0 %891
        %v894 = vmul.f32 %v866, %v877
        %v895 = vmul.f32 %v867, %v882
        %v896 = vmul.f32 %v868, %v887
        %v897 = vmul.f32 %v869, %v892
        %v898 = vld [vmem:[%s9] sm:$0xff]
        %v899 = vld [vmem:[%s9 + $0x8] sm:$0xff]
        %v900 = vld [vmem:[%s9 + $0x10] sm:$0xff]
        %v901 = vld [vmem:[%s9 + $0x18] sm:$0xff]
        %903 = vset.pattern.permute.xlu0 0
        %904 = vperm.xlu0 %903, %v898
        %v905 = vpop.permute.xlu0 %904
        %908 = vset.pattern.permute.xlu0 0
        %909 = vperm.xlu0 %908, %v899
        %v910 = vpop.permute.xlu0 %909
        %913 = vset.pattern.permute.xlu0 0
        %914 = vperm.xlu0 %913, %v900
        %v915 = vpop.permute.xlu0 %914
        %918 = vset.pattern.permute.xlu0 0
        %919 = vperm.xlu0 %918, %v901
        %v920 = vpop.permute.xlu0 %919
        %v922 = vadd.f32 %v894, %v905
        %v923 = vadd.f32 %v895, %v910
        %v924 = vadd.f32 %v896, %v915
        %v925 = vadd.f32 %v897, %v920
        %v926 = vmul.f32 %v922, %v435
        %v927 = vmul.f32 %v923, %v435
        %v928 = vmul.f32 %v924, %v435
        %v929 = vmul.f32 %v925, %v435
        %v930 = vld [vmem:[%s10] sm:$0xff]
        %v931 = vld [vmem:[%s10 + $0x8] sm:$0xff]
        %v932 = vld [vmem:[%s10 + $0x10] sm:$0xff]
        %v933 = vld [vmem:[%s10 + $0x18] sm:$0xff]
        %935 = vset.pattern.permute.xlu0 0
        %936 = vperm.xlu0 %935, %v930
        %v937 = vpop.permute.xlu0 %936
        %940 = vset.pattern.permute.xlu0 0
        %941 = vperm.xlu0 %940, %v931
        %v942 = vpop.permute.xlu0 %941
        %945 = vset.pattern.permute.xlu0 0
        %946 = vperm.xlu0 %945, %v932
        %v947 = vpop.permute.xlu0 %946
        %950 = vset.pattern.permute.xlu0 0
        %951 = vperm.xlu0 %950, %v933
        %v952 = vpop.permute.xlu0 %951
        %v954 = vmul.f32 %v926, %v937
        %v955 = vmul.f32 %v927, %v942
        %v956 = vmul.f32 %v928, %v947
        %v957 = vmul.f32 %v929, %v952
        %v958 = vsel %vm568, %v954, 0.0
        %v959 = vsel %vm568, %v955, 0.0
        %v960 = vadd.f32 %v958, %v959
        %v961 = vsel %vm568, %v956, 0.0
        %v962 = vadd.f32 %v960, %v961
        %v963 = vsel %vm568, %v957, 0.0
        %v964 = vadd.f32 %v962, %v963
        %v965 = vrot.slane %v964, 4
        %v966 = vadd.f32 %v964, %v965
        %v967 = vrot.slane %v966, 2
        %v968 = vadd.f32 %v966, %v967
        %v969 = vrot.slane %v968, 1
        %v970 = vadd.f32 %v968, %v969
        %v971 = vld [vmem:[#allocation2] sm:$0x1]
        %973 = vset.pattern.permute.xlu0 0
        %974 = vperm.xlu0 %973, %v971
        %v975 = vpop.permute.xlu0 %974
        %v977 = vlaneseq
        %v978 = vshrl.u32 %v977, 7
        %v979 = vsub.s32 0, %v978
        %v980 = vrot.slane %v975, %v979
        %v981 = vadd.f32 %v970, %v980
        %v982 = vmul.f32 %v981, %v430
        %vm983 = vcmask 122880
        %984 = vst.msk [vmem:[%s418] sm:$0x1] %vm983, %v982
        %s985 = sand.u32 %s298, 1
        %s986 = scalar_lea.sflag [#allocation4], %s985
        %s987 = sand.u32 %s298, 1
        %s988 = scalar_lea.vmem [#allocation3], %s987
        // Predicated region
        $region69: #{tpu_custom_call.1} parent=67 // pred_check
          %p989 = pneg %p308
        $region70: #{tpu_custom_call.1} parent=67 // pred_check_branch
          %991 = sbr.rel (%p989) target = $region72
        $region71: #{tpu_custom_call.1} parent=67 // pred_region
          %s993 = ssub.s32 16, 16
          %994 = vsyncadd %s986, %s993
          %s995 = smul.addr %s28, 16
          %s996 = scalar_lea.hbm %s12, %s995
          %s998 = sshll.u32 %s988, 4
          %s999 = int_to_ptr.vmem [resolvable:$true] %s998
          %1001 = dma.vmem_to_hbm [thread:$0]  %s999, 16, %s996, %s986
        $region72: #{tpu_custom_call.1} parent=67 // pred_fallthru
          _
      $region68: #{tpu_custom_call.1} parent=5 // pred_fallthru
        _
      %p1002 = scmp.le.s32.totalorder 2, %s23
      // Predicated region
      $region73: #{tpu_custom_call.1} parent=5 // pred_check
        %p1003 = pneg %p1002
      $region74: #{tpu_custom_call.1} parent=5 // pred_check_branch
        %1005 = sbr.rel (%p1003) target = $region76
      $region75: #{tpu_custom_call.1} parent=5 // pred_region
        %s1006 = ssub.s32 %s23, 2
        // Predicated region
        $region77: #{tpu_custom_call.1} parent=75 // pred_check
          %p1007 = pneg %p314
        $region78: #{tpu_custom_call.1} parent=75 // pred_check_branch
          %1009 = sbr.rel (%p1007) target = $region80
        $region79: #{tpu_custom_call.1} parent=75 // pred_region
          %s1010 = sand.u32 %s299, 1
          %s1011 = scalar_lea.sflag [#allocation4], %s1010
          %s1012 = sand.u32 %s299, 1
          %s1013 = scalar_lea.vmem [#allocation3], %s1012
          %1014 = dma.done %s1011, 16
        $region80: #{tpu_custom_call.1} parent=75 // pred_fallthru
          _
      $region76: #{tpu_custom_call.1} parent=5 // pred_fallthru
        _
    $region6: #{tpu_custom_call.1} parent=1 // loop_footer
      %s27 = sadd.s32 1, %s23
    $region7: #{tpu_custom_call.1} parent=1 // loop_footer_branch
      %22 = sbr.rel target = $region3
    $region8: #{tpu_custom_call.1} parent=1 // loop_exit
      _
    %1015 = vsyncpa [#allocation4], 1
    %s1016 = scalar_lea.sflag [#allocation4], 1
    %1017 = vsyncpa %s1016, 1

</llo_original>
